<compile_context>
chip_gen: v7x
topology: tpu7x:2x2x1
jax: 0.10.0
libtpu: 0.0.40
codegen_flags: <defaults>
</compile_context>

<pallas_src>
import functools

import jax
import jax.numpy as jnp
from jax.experimental import pallas as pl
from jax.experimental.pallas import tpu as pltpu

LANES = 128        # TPU lane width; every feature dim is padded to this.
NUM_LAYERS = 4


def _round_up(x, m):
    return (x + m - 1) // m * m


# ----------------------------------------------------------------------------
# Kernel: the whole 4-layer MLP hot path on one (TB, 128) batch tile.
# ----------------------------------------------------------------------------
def agent_mlp_kernel(w_ref, b_ref, x_ref, out_ref):
    """w_ref: (4,128,128) packed weights, b_ref: (4,128) packed biases,
    x_ref/out_ref: (TB,128) lane-padded activations."""
    x = x_ref[...]
    b = b_ref[...]          # single (4,128) load; rows broadcast per layer

    # Layers 1..3: matmul (MXU, f32 accumulate) + bias + ReLU (VPU).
    h = jnp.dot(x, w_ref[0], preferred_element_type=jnp.float32) + b[0:1, :]
    h = jnp.maximum(h, 0.0)

    h = jnp.dot(h, w_ref[1], preferred_element_type=jnp.float32) + b[1:2, :]
    h = jnp.maximum(h, 0.0)

    h = jnp.dot(h, w_ref[2], preferred_element_type=jnp.float32) + b[2:3, :]
    h = jnp.maximum(h, 0.0)

    # Layer 4: no activation; lane-dense (TB,128) store, real actions live in
    # lanes [0, n_actions); padded lanes are exactly zero.
    y = jnp.dot(h, w_ref[3], preferred_element_type=jnp.float32) + b[3:4, :]
    out_ref[...] = y.astype(out_ref.dtype)


# ----------------------------------------------------------------------------
# Parameter handling
# ----------------------------------------------------------------------------
def init_linear_params(key, fan_in, fan_out):
    """Mimics torch.nn.Linear default init: U[-1/sqrt(fan_in), 1/sqrt(fan_in)].
    Weight stored as (in, out), i.e. already transposed vs. PyTorch's (out, in)."""
    kw, kb = jax.random.split(key)
    bound = 1.0 / jnp.sqrt(jnp.float32(fan_in))
    w = jax.random.uniform(kw, (fan_in, fan_out), jnp.float32, -bound, bound)
    b = jax.random.uniform(kb, (fan_out,), jnp.float32, -bound, bound)
    return w, b


def make_agent_params(key, n_observations, n_actions):
    k1, k2, k3, k4 = jax.random.split(key, 4)
    return (
        init_linear_params(k1, n_observations, 4),
        init_linear_params(k2, 4, 24),
        init_linear_params(k3, 24, 24),
        init_linear_params(k4, 24, n_actions),
    )


def pack_agent_params(params):
    """Zero-pad every layer to (128,128)/(128,) and stack into two slabs.

    Zero padding is load-bearing: padded input lanes hit zero weight rows
    (-> 0), zero bias keeps them 0, ReLU keeps them 0, so padded lanes never
    pollute later layers.  Done once, outside the per-call hot path.
    """
    w_slab = jnp.zeros((NUM_LAYERS, LANES, LANES), jnp.float32)
    b_slab = jnp.zeros((NUM_LAYERS, LANES), jnp.float32)
    for i, (w, b) in enumerate(params):
        fan_in, fan_out = w.shape
        w_slab = w_slab.at[i, :fan_in, :fan_out].set(w)
        b_slab = b_slab.at[i, :fan_out].set(b)
    n_actions = params[-1][0].shape[1]
    return w_slab, b_slab, n_actions


# ----------------------------------------------------------------------------
# Wrapper: batch-tiled, weights VMEM-resident, lane-dense output.
# ----------------------------------------------------------------------------
@functools.partial(jax.jit, static_argnames=("n_actions", "tile_b"))
def _agent_forward_packed(x, w_slab, b_slab, *, n_actions, tile_b):
    batch, n_obs = x.shape

    # Batch tile: large enough to amortize the ~0.35us/step grid overhead,
    # rounded to the 8-sublane granule, never larger than the (padded) batch.
    tb = min(tile_b, _round_up(batch, 8))
    tb = _round_up(tb, 8)
    b_pad = _round_up(batch, tb)
    grid = (b_pad // tb,)

    # Lane- and batch-pad x with zeros (padded rows are sliced off below).
    x_p = jnp.zeros((b_pad, LANES), jnp.float32).at[:batch, :n_obs].set(x)

    flops = 2 * b_pad * LANES * LANES * NUM_LAYERS
    bytes_accessed = 4 * (2 * b_pad * LANES
                          + NUM_LAYERS * LANES * LANES
                          + NUM_LAYERS * LANES)

    out = pl.pallas_call(
        agent_mlp_kernel,
        out_shape=jax.ShapeDtypeStruct((b_pad, LANES), jnp.float32),
        grid_spec=pltpu.PrefetchScalarGridSpec(
            num_scalar_prefetch=0,
            grid=grid,
            in_specs=[
                # Weight/bias slabs: constant index_map -> stay resident in
                # VMEM across every batch tile (single DMA each).
                pl.BlockSpec((NUM_LAYERS, LANES, LANES), lambda i: (0, 0, 0)),
                pl.BlockSpec((NUM_LAYERS, LANES), lambda i: (0, 0)),
                # Activations: tiled over the batch grid, auto-pipelined.
                pl.BlockSpec((tb, LANES), lambda i: (i, 0)),
            ],
            out_specs=pl.BlockSpec((tb, LANES), lambda i: (i, 0)),
        ),
        compiler_params=pltpu.CompilerParams(
            dimension_semantics=("parallel",),   # v7x: shard batch over 2 TCs
        ),
        cost_estimate=pl.CostEstimate(
            flops=flops, transcendentals=0, bytes_accessed=bytes_accessed),
    )(w_slab, b_slab, x_p)

    # Drop batch padding and padded action lanes (must happen before any
    # argmax in the DQN policy).
    return out[:batch, :n_actions]


def agent_forward(x, packed_params, *, tile_b=256):
    """x: (B, n_observations) f32.  packed_params: output of pack_agent_params."""
    w_slab, b_slab, n_actions = packed_params
    return _agent_forward_packed(
        x, w_slab, b_slab, n_actions=n_actions, tile_b=tile_b)


# ----------------------------------------------------------------------------
# Plain-JAX reference (unpadded params) for sanity checking.
# ----------------------------------------------------------------------------
def reference_forward(x, params):
    (w1, b1), (w2, b2), (w3, b3), (w4, b4) = params
    h = jnp.maximum(x @ w1 + b1, 0.0)
    h = jnp.maximum(h @ w2 + b2, 0.0)
    h = jnp.maximum(h @ w3 + b3, 0.0)
    return h @ w4 + b4


# TODO(synk): Agent.choose_action (epsilon-greedy over env.action_space / a
# Python q_table) is host-side control flow, not a kernel concern.

if __name__ == "__main__":
    # CartPole-v1: n_observations=4, n_actions=2; small deterministic batch.
    n_observations, n_actions = 4, 2
    batch = 8

    key = jax.random.PRNGKey(0)
    key_params, key_x = jax.random.split(key)

    params = make_agent_params(key_params, n_observations, n_actions)
    packed = pack_agent_params(params)
    x = jax.random.normal(key_x, (batch, n_observations), jnp.float32)

    out = agent_forward(x, packed)
    out = jax.block_until_ready(out)

    ref = reference_forward(x, params)
    assert out.shape == (batch, n_actions), out.shape
    assert jnp.allclose(out, ref, atol=1e-5, rtol=1e-5), jnp.max(jnp.abs(out - ref))

    # Also exercise the multi-tile / batch-padded path (grid > 1) once.
    big_batch = 600
    xb = jax.random.normal(jax.random.PRNGKey(1), (big_batch, n_observations),
                           jnp.float32)
    out_b = jax.block_until_ready(agent_forward(xb, packed))
    ref_b = reference_forward(xb, params)
    assert out_b.shape == (big_batch, n_actions)
    assert jnp.allclose(out_b, ref_b, atol=1e-5, rtol=1e-5)

    print("KERNEL_OK")
</pallas_src>

<mosaic_0001>
module attributes {stable_mosaic.version = 11 : i64} {
  func.func @agent_mlp_kernel(%arg0: i32, %arg1: memref<4x128x128xf32, #tpu.memory_space<vmem>>, %arg2: memref<4x128xf32, #tpu.memory_space<vmem>>, %arg3: memref<8x128xf32, #tpu.memory_space<vmem>>, %arg4: memref<8x128xf32, #tpu.memory_space<vmem>>) attributes {dimension_semantics = [#tpu.dimension_semantics<parallel>], iteration_bounds = array<i64: 1>, scalar_prefetch = 0 : i64, scratch_operands = 0 : i64, tpu.core_type = #tpu.core_type<tc>, window_params = [{pipeline_mode = #tpu.pipeline_mode<synchronous>, transform_indices = @transform_0, window_bounds = array<i64: 4, 128, 128>}, {pipeline_mode = #tpu.pipeline_mode<synchronous>, transform_indices = @transform_1, window_bounds = array<i64: 4, 128>}, {transform_indices = @transform_2, window_bounds = array<i64: 8, 128>}, {transform_indices = @transform_3, window_bounds = array<i64: 8, 128>}]} {
    %c0 = arith.constant 0 : index
    %c0_0 = arith.constant 0 : index
    %0 = vector.load %arg3[%c0, %c0_0] : memref<8x128xf32, #tpu.memory_space<vmem>>, vector<8x128xf32>
    %c0_1 = arith.constant 0 : index
    %c0_2 = arith.constant 0 : index
    %1 = vector.load %arg2[%c0_1, %c0_2] : memref<4x128xf32, #tpu.memory_space<vmem>>, vector<4x128xf32>
    %c0_3 = arith.constant 0 : index
    %c0_4 = arith.constant 0 : index
    %c0_5 = arith.constant 0 : index
    %2 = vector.load %arg1[%c0_3, %c0_4, %c0_5] : memref<4x128x128xf32, #tpu.memory_space<vmem>>, vector<1x128x128xf32>
    %3 = vector.shape_cast %2 : vector<1x128x128xf32> to vector<128x128xf32>
    %cst = arith.constant dense<0.000000e+00> : vector<8x128xf32>
    %4 = tpu.matmul %0, %3, %cst {dimension_numbers = #tpu.dot_dimension_numbers<[1], [0], [0], [1], [0, 0, 1, 1], [], []>} : vector<8x128xf32>, vector<128x128xf32>, vector<8x128xf32> -> vector<8x128xf32>
    %5 = vector.extract_strided_slice %1 {offsets = [0, 0], sizes = [1, 128], strides = [1, 1]} : vector<4x128xf32> to vector<1x128xf32>
    %6 = vector.broadcast %5 : vector<1x128xf32> to vector<8x128xf32>
    %7 = arith.addf %4, %6 : vector<8x128xf32>
    %cst_6 = arith.constant 0.000000e+00 : f32
    %8 = vector.broadcast %cst_6 : f32 to vector<8x128xf32>
    %9 = arith.maximumf %7, %8 : vector<8x128xf32>
    %c1 = arith.constant 1 : index
    %c0_7 = arith.constant 0 : index
    %c0_8 = arith.constant 0 : index
    %10 = vector.load %arg1[%c1, %c0_7, %c0_8] : memref<4x128x128xf32, #tpu.memory_space<vmem>>, vector<1x128x128xf32>
    %11 = vector.shape_cast %10 : vector<1x128x128xf32> to vector<128x128xf32>
    %cst_9 = arith.constant dense<0.000000e+00> : vector<8x128xf32>
    %12 = tpu.matmul %9, %11, %cst_9 {dimension_numbers = #tpu.dot_dimension_numbers<[1], [0], [0], [1], [0, 0, 1, 1], [], []>} : vector<8x128xf32>, vector<128x128xf32>, vector<8x128xf32> -> vector<8x128xf32>
    %13 = vector.extract_strided_slice %1 {offsets = [1, 0], sizes = [1, 128], strides = [1, 1]} : vector<4x128xf32> to vector<1x128xf32>
    %14 = vector.broadcast %13 : vector<1x128xf32> to vector<8x128xf32>
    %15 = arith.addf %12, %14 : vector<8x128xf32>
    %cst_10 = arith.constant 0.000000e+00 : f32
    %16 = vector.broadcast %cst_10 : f32 to vector<8x128xf32>
    %17 = arith.maximumf %15, %16 : vector<8x128xf32>
    %c2 = arith.constant 2 : index
    %c0_11 = arith.constant 0 : index
    %c0_12 = arith.constant 0 : index
    %18 = vector.load %arg1[%c2, %c0_11, %c0_12] : memref<4x128x128xf32, #tpu.memory_space<vmem>>, vector<1x128x128xf32>
    %19 = vector.shape_cast %18 : vector<1x128x128xf32> to vector<128x128xf32>
    %cst_13 = arith.constant dense<0.000000e+00> : vector<8x128xf32>
    %20 = tpu.matmul %17, %19, %cst_13 {dimension_numbers = #tpu.dot_dimension_numbers<[1], [0], [0], [1], [0, 0, 1, 1], [], []>} : vector<8x128xf32>, vector<128x128xf32>, vector<8x128xf32> -> vector<8x128xf32>
    %21 = vector.extract_strided_slice %1 {offsets = [2, 0], sizes = [1, 128], strides = [1, 1]} : vector<4x128xf32> to vector<1x128xf32>
    %22 = vector.broadcast %21 : vector<1x128xf32> to vector<8x128xf32>
    %23 = arith.addf %20, %22 : vector<8x128xf32>
    %cst_14 = arith.constant 0.000000e+00 : f32
    %24 = vector.broadcast %cst_14 : f32 to vector<8x128xf32>
    %25 = arith.maximumf %23, %24 : vector<8x128xf32>
    %c3 = arith.constant 3 : index
    %c0_15 = arith.constant 0 : index
    %c0_16 = arith.constant 0 : index
    %26 = vector.load %arg1[%c3, %c0_15, %c0_16] : memref<4x128x128xf32, #tpu.memory_space<vmem>>, vector<1x128x128xf32>
    %27 = vector.shape_cast %26 : vector<1x128x128xf32> to vector<128x128xf32>
    %cst_17 = arith.constant dense<0.000000e+00> : vector<8x128xf32>
    %28 = tpu.matmul %25, %27, %cst_17 {dimension_numbers = #tpu.dot_dimension_numbers<[1], [0], [0], [1], [0, 0, 1, 1], [], []>} : vector<8x128xf32>, vector<128x128xf32>, vector<8x128xf32> -> vector<8x128xf32>
    %29 = vector.extract_strided_slice %1 {offsets = [3, 0], sizes = [1, 128], strides = [1, 1]} : vector<4x128xf32> to vector<1x128xf32>
    %30 = vector.broadcast %29 : vector<1x128xf32> to vector<8x128xf32>
    %31 = arith.addf %28, %30 : vector<8x128xf32>
    %c0_18 = arith.constant 0 : index
    %c0_19 = arith.constant 0 : index
    %32 = vector.load %arg4[%c0_18, %c0_19] : memref<8x128xf32, #tpu.memory_space<vmem>>, vector<8x128xf32>
    tpu.vector_store %arg4[%c0_18, %c0_19], %31 {strides = array<i32>} : memref<8x128xf32, #tpu.memory_space<vmem>>, vector<8x128xf32>,
    return
  }
  func.func @transform_0(%arg0: i32) -> (i32, i32, i32) {
    %c0_i32 = arith.constant 0 : i32
    %c0_i32_0 = arith.constant 0 : i32
    %c0_i32_1 = arith.constant 0 : i32
    %c0_i32_2 = arith.constant 0 : i32
    return %c0_i32, %c0_i32_0, %c0_i32_1 : i32, i32, i32
  }
  func.func @transform_1(%arg0: i32) -> (i32, i32) {
    %c0_i32 = arith.constant 0 : i32
    %c0_i32_0 = arith.constant 0 : i32
    %c0_i32_1 = arith.constant 0 : i32
    return %c0_i32, %c0_i32_0 : i32, i32
  }
  func.func @transform_2(%arg0: i32) -> (i32, i32) {
    %c0_i32 = arith.constant 0 : i32
    %c0_i32_0 = arith.constant 0 : i32
    return %arg0, %c0_i32 : i32, i32
  }
  func.func @transform_3(%arg0: i32) -> (i32, i32) {
    %c0_i32 = arith.constant 0 : i32
    %c0_i32_0 = arith.constant 0 : i32
    return %arg0, %c0_i32 : i32, i32
  }
}

</mosaic_0001>

<llo_original>
// kernel: _agent_forward_packed.1
$region0: #{_agent_forward_packed.1}
  #allocation0 [shape = 'u32[]', space=smem, size = 0x4, offset = 0x4, fixed_abs, tag = 'smem constant byte address 0x4 - core index']
  #allocation1 [shape = 'u32[144,128]{1,0:T(1,128)}', space=vmem, size = 0x12000, scoped, tag = 'internal scratch']
  %s0 = inlined_call_operand.hbm [shape: f32[4,128,128], index: 0, kind: input, shape index: {}]
  %s1 = inlined_call_operand.vmem [shape: f32[4,128], index: 1, kind: input, shape index: {}]
  %s2 = inlined_call_operand.vmem [shape: f32[8,128], index: 2, kind: input, shape index: {}]
  %s3 = inlined_call_operand.vmem [shape: f32[8,128], index: 3, kind: output, shape index: {}]
  %s4 = sld [smem:[#allocation0]]
  $region26: #{_agent_forward_packed.1} parent=0
    _
  %s6 = ssub.s32 1, %s4
  %s7 = scalar_select 0, %s6, %s4
  $region1: #{_agent_forward_packed.1} parent=0
    #allocation2 [shape = 'u8[262144]{0}', space=vmem, size = 0x40000, scoped, tag = 'input window, operand 0, single buffered']
    #allocation3 [shape = 's32[1]{0}', space=sflag, size = 0x4, scoped, tag = 'scoped memory for _agent_forward_packed.1']
    %8 = vsyncpa [#allocation3], 0
    // Predicated region
    $region2: #{_agent_forward_packed.1} parent=1 // pred_check
      _
    $region3: #{_agent_forward_packed.1} parent=1 // pred_check_branch
      %10 = sbr.rel (0) target = $region5
    $region4: #{_agent_forward_packed.1} parent=1 // pred_region
      %s12 = ssub.s32 8192, 8192
      %13 = vsyncadd [#allocation3], %s12
      %s14 = sshll.u32 [#allocation2], 4
      %s15 = int_to_ptr.vmem [resolvable:$true] %s14
      %20 = dma.hbm_to_vmem [thread:$0]  %s0, 8192, %s15, [#allocation3], 128, 128, 8
    $region5: #{_agent_forward_packed.1} parent=1 // pred_fallthru
      _
    // Predicated region
    $region6: #{_agent_forward_packed.1} parent=1 // pred_check
      _
    $region7: #{_agent_forward_packed.1} parent=1 // pred_check_branch
      %22 = sbr.rel (0) target = $region9
    $region8: #{_agent_forward_packed.1} parent=1 // pred_region
      _
    $region9: #{_agent_forward_packed.1} parent=1 // pred_fallthru
      _
    // Predicated region
    $region10: #{_agent_forward_packed.1} parent=1 // pred_check
      _
    $region11: #{_agent_forward_packed.1} parent=1 // pred_check_branch
      %24 = sbr.rel (0) target = $region13
    $region12: #{_agent_forward_packed.1} parent=1 // pred_region
      _
    $region13: #{_agent_forward_packed.1} parent=1 // pred_fallthru
      _
    // Predicated region
    $region14: #{_agent_forward_packed.1} parent=1 // pred_check
      _
    $region15: #{_agent_forward_packed.1} parent=1 // pred_check_branch
      %26 = sbr.rel (0) target = $region17
    $region16: #{_agent_forward_packed.1} parent=1 // pred_region
      %27 = dma.done [#allocation3], 8192
    $region17: #{_agent_forward_packed.1} parent=1 // pred_fallthru
      _
    %v28 = vld [vmem:[%s2] sm:$0xff]
    %v29 = vld [vmem:[%s1] sm:$0xf]
    %v30 = vld [vmem:[#allocation2] sm:$0xff]
    %v31 = vld [vmem:[#allocation2 + $0x8] sm:$0xff]
    %v32 = vld [vmem:[#allocation2 + $0x10] sm:$0xff]
    %v33 = vld [vmem:[#allocation2 + $0x18] sm:$0xff]
    %v34 = vld [vmem:[#allocation2 + $0x20] sm:$0xff]
    %v35 = vld [vmem:[#allocation2 + $0x28] sm:$0xff]
    %v36 = vld [vmem:[#allocation2 + $0x30] sm:$0xff]
    %v37 = vld [vmem:[#allocation2 + $0x38] sm:$0xff]
    %v38 = vld [vmem:[#allocation2 + $0x40] sm:$0xff]
    %v39 = vld [vmem:[#allocation2 + $0x48] sm:$0xff]
    %v40 = vld [vmem:[#allocation2 + $0x50] sm:$0xff]
    %v41 = vld [vmem:[#allocation2 + $0x58] sm:$0xff]
    %v42 = vld [vmem:[#allocation2 + $0x60] sm:$0xff]
    %v43 = vld [vmem:[#allocation2 + $0x68] sm:$0xff]
    %v44 = vld [vmem:[#allocation2 + $0x70] sm:$0xff]
    %v45 = vld [vmem:[#allocation2 + $0x78] sm:$0xff]
    %v46 = vlaneseq
    %v47 = vshrl.u32 %v46, 7
    %v48 = vsub.s32 0, %v47
    %v49 = vrot.slane %v29, %v48
    %50 = vmatprep.subr.mxu0 0.0
    %51 = vmatpush1.msra.mxu0 %v30
    %52 = vmatprep.subr.mxu0 0.0
    %53 = vmatpush1.msra.mxu0 %v31
    %54 = vmatprep.subr.mxu0 0.0
    %55 = vmatpush1.msra.mxu0 %v32
    %56 = vmatprep.subr.mxu0 0.0
    %57 = vmatpush1.msra.mxu0 %v33
    %58 = vmatprep.subr.mxu0 0.0
    %59 = vmatpush1.msra.mxu0 %v34
    %60 = vmatprep.subr.mxu0 0.0
    %61 = vmatpush1.msra.mxu0 %v35
    %62 = vmatprep.subr.mxu0 0.0
    %63 = vmatpush1.msra.mxu0 %v36
    %64 = vmatprep.subr.mxu0 0.0
    %65 = vmatpush1.msra.mxu0 %v37
    %66 = vmatprep.subr.mxu0 0.0
    %67 = vmatpush1.msra.mxu0 %v38
    %68 = vmatprep.subr.mxu0 0.0
    %69 = vmatpush1.msra.mxu0 %v39
    %70 = vmatprep.subr.mxu0 0.0
    %71 = vmatpush1.msra.mxu0 %v40
    %72 = vmatprep.subr.mxu0 0.0
    %73 = vmatpush1.msra.mxu0 %v41
    %74 = vmatprep.subr.mxu0 0.0
    %75 = vmatpush1.msra.mxu0 %v42
    %76 = vmatprep.subr.mxu0 0.0
    %77 = vmatpush1.msra.mxu0 %v43
    %78 = vmatprep.subr.mxu0 0.0
    %79 = vmatpush1.msra.mxu0 %v44
    %80 = vmatprep.subr.mxu0 0.0
    %81 = vmatpush1.msra.mxu0 %v45
    %82 = vmatprep.subr.mxu0 0.0
    %83 = vmatpush1.msra.mxu0 0.0
    %84 = vmatprep.subr.mxu0 0.0
    %85 = vmatpush1.msra.mxu0 0.0
    %86 = vmatprep.subr.mxu0 0.0
    %87 = vmatpush1.msra.mxu0 0.0
    %88 = vmatprep.subr.mxu0 0.0
    %89 = vmatpush1.msra.mxu0 0.0
    %90 = vmatprep.subr.mxu0 0.0
    %91 = vmatpush1.msra.mxu0 0.0
    %92 = vmatprep.subr.mxu0 0.0
    %93 = vmatpush1.msra.mxu0 0.0
    %94 = vmatprep.subr.mxu0 0.0
    %95 = vmatpush1.msra.mxu0 0.0
    %96 = vmatprep.subr.mxu0 0.0
    %97 = vmatpush1.msra.mxu0 0.0
    %98 = vmatprep.subr.mxu0 0.0
    %99 = vmatpush1.msra.mxu0 0.0
    %100 = vmatprep.subr.mxu0 0.0
    %101 = vmatpush1.msra.mxu0 0.0
    %102 = vmatprep.subr.mxu0 0.0
    %103 = vmatpush1.msra.mxu0 0.0
    %104 = vmatprep.subr.mxu0 0.0
    %105 = vmatpush1.msra.mxu0 0.0
    %106 = vmatprep.subr.mxu0 0.0
    %107 = vmatpush1.msra.mxu0 0.0
    %108 = vmatprep.subr.mxu0 0.0
    %109 = vmatpush1.msra.mxu0 0.0
    %110 = vmatprep.subr.mxu0 0.0
    %111 = vmatpush1.msra.mxu0 0.0
    %112 = vmatprep.subr.mxu0 0.0
    %113 = vmatpush1.msra.mxu0 0.0
    %114 = vmatprep.mubr.f32.mxu0 0.0
    %115 = vmatmul.mubr.f32.gmra.mrb[0].mxu0 %v28
    %v116 = vpop.f32.mrb[0].mxu0
    %v117 = vadd.f32 %v49, %v116
    %v118 = vpop.f32.mrb[0].mxu0
    %119 = vdwg.mxu0
    %v120 = vmax.f32 %v117, 0.0
    %s121 = scalar_lea.vmem [#allocation2], 128
    %v122 = vld [vmem:[%s121] sm:$0xff]
    %v123 = vld [vmem:[%s121 + $0x8] sm:$0xff]
    %v124 = vld [vmem:[%s121 + $0x10] sm:$0xff]
    %v125 = vld [vmem:[%s121 + $0x18] sm:$0xff]
    %v126 = vld [vmem:[%s121 + $0x20] sm:$0xff]
    %v127 = vld [vmem:[%s121 + $0x28] sm:$0xff]
    %v128 = vld [vmem:[%s121 + $0x30] sm:$0xff]
    %v129 = vld [vmem:[%s121 + $0x38] sm:$0xff]
    %v130 = vld [vmem:[%s121 + $0x40] sm:$0xff]
    %v131 = vld [vmem:[%s121 + $0x48] sm:$0xff]
    %v132 = vld [vmem:[%s121 + $0x50] sm:$0xff]
    %v133 = vld [vmem:[%s121 + $0x58] sm:$0xff]
    %v134 = vld [vmem:[%s121 + $0x60] sm:$0xff]
    %v135 = vld [vmem:[%s121 + $0x68] sm:$0xff]
    %v136 = vld [vmem:[%s121 + $0x70] sm:$0xff]
    %v137 = vld [vmem:[%s121 + $0x78] sm:$0xff]
    %v138 = vlaneseq
    %v139 = vshrl.u32 %v138, 7
    %v140 = vsub.s32 1, %v139
    %v141 = vrot.slane %v29, %v140
    %142 = vmatprep.subr.mxu0 0.0
    %143 = vmatpush1.msra.mxu0 %v122
    %144 = vmatprep.subr.mxu0 0.0
    %145 = vmatpush1.msra.mxu0 %v123
    %146 = vmatprep.subr.mxu0 0.0
    %147 = vmatpush1.msra.mxu0 %v124
    %148 = vmatprep.subr.mxu0 0.0
    %149 = vmatpush1.msra.mxu0 %v125
    %150 = vmatprep.subr.mxu0 0.0
    %151 = vmatpush1.msra.mxu0 %v126
    %152 = vmatprep.subr.mxu0 0.0
    %153 = vmatpush1.msra.mxu0 %v127
    %154 = vmatprep.subr.mxu0 0.0
    %155 = vmatpush1.msra.mxu0 %v128
    %156 = vmatprep.subr.mxu0 0.0
    %157 = vmatpush1.msra.mxu0 %v129
    %158 = vmatprep.subr.mxu0 0.0
    %159 = vmatpush1.msra.mxu0 %v130
    %160 = vmatprep.subr.mxu0 0.0
    %161 = vmatpush1.msra.mxu0 %v131
    %162 = vmatprep.subr.mxu0 0.0
    %163 = vmatpush1.msra.mxu0 %v132
    %164 = vmatprep.subr.mxu0 0.0
    %165 = vmatpush1.msra.mxu0 %v133
    %166 = vmatprep.subr.mxu0 0.0
    %167 = vmatpush1.msra.mxu0 %v134
    %168 = vmatprep.subr.mxu0 0.0
    %169 = vmatpush1.msra.mxu0 %v135
    %170 = vmatprep.subr.mxu0 0.0
    %171 = vmatpush1.msra.mxu0 %v136
    %172 = vmatprep.subr.mxu0 0.0
    %173 = vmatpush1.msra.mxu0 %v137
    %174 = vmatprep.subr.mxu0 0.0
    %175 = vmatpush1.msra.mxu0 0.0
    %176 = vmatprep.subr.mxu0 0.0
    %177 = vmatpush1.msra.mxu0 0.0
    %178 = vmatprep.subr.mxu0 0.0
    %179 = vmatpush1.msra.mxu0 0.0
    %180 = vmatprep.subr.mxu0 0.0
    %181 = vmatpush1.msra.mxu0 0.0
    %182 = vmatprep.subr.mxu0 0.0
    %183 = vmatpush1.msra.mxu0 0.0
    %184 = vmatprep.subr.mxu0 0.0
    %185 = vmatpush1.msra.mxu0 0.0
    %186 = vmatprep.subr.mxu0 0.0
    %187 = vmatpush1.msra.mxu0 0.0
    %188 = vmatprep.subr.mxu0 0.0
    %189 = vmatpush1.msra.mxu0 0.0
    %190 = vmatprep.subr.mxu0 0.0
    %191 = vmatpush1.msra.mxu0 0.0
    %192 = vmatprep.subr.mxu0 0.0
    %193 = vmatpush1.msra.mxu0 0.0
    %194 = vmatprep.subr.mxu0 0.0
    %195 = vmatpush1.msra.mxu0 0.0
    %196 = vmatprep.subr.mxu0 0.0
    %197 = vmatpush1.msra.mxu0 0.0
    %198 = vmatprep.subr.mxu0 0.0
    %199 = vmatpush1.msra.mxu0 0.0
    %200 = vmatprep.subr.mxu0 0.0
    %201 = vmatpush1.msra.mxu0 0.0
    %202 = vmatprep.subr.mxu0 0.0
    %203 = vmatpush1.msra.mxu0 0.0
    %204 = vmatprep.subr.mxu0 0.0
    %205 = vmatpush1.msra.mxu0 0.0
    %206 = vmatprep.mubr.f32.mxu0 0.0
    %207 = vmatmul.mubr.f32.gmra.mrb[0].mxu0 %v120
    %v208 = vpop.f32.mrb[0].mxu0
    %v209 = vadd.f32 %v141, %v208
    %v210 = vpop.f32.mrb[0].mxu0
    %211 = vdwg.mxu0
    %v212 = vmax.f32 %v209, 0.0
    %s213 = scalar_lea.vmem [#allocation2], 256
    %v214 = vld [vmem:[%s213] sm:$0xff]
    %v215 = vld [vmem:[%s213 + $0x8] sm:$0xff]
    %v216 = vld [vmem:[%s213 + $0x10] sm:$0xff]
    %v217 = vld [vmem:[%s213 + $0x18] sm:$0xff]
    %v218 = vld [vmem:[%s213 + $0x20] sm:$0xff]
    %v219 = vld [vmem:[%s213 + $0x28] sm:$0xff]
    %v220 = vld [vmem:[%s213 + $0x30] sm:$0xff]
    %v221 = vld [vmem:[%s213 + $0x38] sm:$0xff]
    %v222 = vld [vmem:[%s213 + $0x40] sm:$0xff]
    %v223 = vld [vmem:[%s213 + $0x48] sm:$0xff]
    %v224 = vld [vmem:[%s213 + $0x50] sm:$0xff]
    %v225 = vld [vmem:[%s213 + $0x58] sm:$0xff]
    %v226 = vld [vmem:[%s213 + $0x60] sm:$0xff]
    %v227 = vld [vmem:[%s213 + $0x68] sm:$0xff]
    %v228 = vld [vmem:[%s213 + $0x70] sm:$0xff]
    %v229 = vld [vmem:[%s213 + $0x78] sm:$0xff]
    %v230 = vlaneseq
    %v231 = vshrl.u32 %v230, 7
    %v232 = vsub.s32 2, %v231
    %v233 = vrot.slane %v29, %v232
    %234 = vmatprep.subr.mxu0 0.0
    %235 = vmatpush1.msra.mxu0 %v214
    %236 = vmatprep.subr.mxu0 0.0
    %237 = vmatpush1.msra.mxu0 %v215
    %238 = vmatprep.subr.mxu0 0.0
    %239 = vmatpush1.msra.mxu0 %v216
    %240 = vmatprep.subr.mxu0 0.0
    %241 = vmatpush1.msra.mxu0 %v217
    %242 = vmatprep.subr.mxu0 0.0
    %243 = vmatpush1.msra.mxu0 %v218
    %244 = vmatprep.subr.mxu0 0.0
    %245 = vmatpush1.msra.mxu0 %v219
    %246 = vmatprep.subr.mxu0 0.0
    %247 = vmatpush1.msra.mxu0 %v220
    %248 = vmatprep.subr.mxu0 0.0
    %249 = vmatpush1.msra.mxu0 %v221
    %250 = vmatprep.subr.mxu0 0.0
    %251 = vmatpush1.msra.mxu0 %v222
    %252 = vmatprep.subr.mxu0 0.0
    %253 = vmatpush1.msra.mxu0 %v223
    %254 = vmatprep.subr.mxu0 0.0
    %255 = vmatpush1.msra.mxu0 %v224
    %256 = vmatprep.subr.mxu0 0.0
    %257 = vmatpush1.msra.mxu0 %v225
    %258 = vmatprep.subr.mxu0 0.0
    %259 = vmatpush1.msra.mxu0 %v226
    %260 = vmatprep.subr.mxu0 0.0
    %261 = vmatpush1.msra.mxu0 %v227
    %262 = vmatprep.subr.mxu0 0.0
    %263 = vmatpush1.msra.mxu0 %v228
    %264 = vmatprep.subr.mxu0 0.0
    %265 = vmatpush1.msra.mxu0 %v229
    %266 = vmatprep.subr.mxu0 0.0
    %267 = vmatpush1.msra.mxu0 0.0
    %268 = vmatprep.subr.mxu0 0.0
    %269 = vmatpush1.msra.mxu0 0.0
    %270 = vmatprep.subr.mxu0 0.0
    %271 = vmatpush1.msra.mxu0 0.0
    %272 = vmatprep.subr.mxu0 0.0
    %273 = vmatpush1.msra.mxu0 0.0
    %274 = vmatprep.subr.mxu0 0.0
    %275 = vmatpush1.msra.mxu0 0.0
    %276 = vmatprep.subr.mxu0 0.0
    %277 = vmatpush1.msra.mxu0 0.0
    %278 = vmatprep.subr.mxu0 0.0
    %279 = vmatpush1.msra.mxu0 0.0
    %280 = vmatprep.subr.mxu0 0.0
    %281 = vmatpush1.msra.mxu0 0.0
    %282 = vmatprep.subr.mxu0 0.0
    %283 = vmatpush1.msra.mxu0 0.0
    %284 = vmatprep.subr.mxu0 0.0
    %285 = vmatpush1.msra.mxu0 0.0
    %286 = vmatprep.subr.mxu0 0.0
    %287 = vmatpush1.msra.mxu0 0.0
    %288 = vmatprep.subr.mxu0 0.0
    %289 = vmatpush1.msra.mxu0 0.0
    %290 = vmatprep.subr.mxu0 0.0
    %291 = vmatpush1.msra.mxu0 0.0
    %292 = vmatprep.subr.mxu0 0.0
    %293 = vmatpush1.msra.mxu0 0.0
    %294 = vmatprep.subr.mxu0 0.0
    %295 = vmatpush1.msra.mxu0 0.0
    %296 = vmatprep.subr.mxu0 0.0
    %297 = vmatpush1.msra.mxu0 0.0
    %298 = vmatprep.mubr.f32.mxu0 0.0
    %299 = vmatmul.mubr.f32.gmra.mrb[0].mxu0 %v212
    %v300 = vpop.f32.mrb[0].mxu0
    %v301 = vadd.f32 %v233, %v300
    %v302 = vpop.f32.mrb[0].mxu0
    %303 = vdwg.mxu0
    %v304 = vmax.f32 %v301, 0.0
    %s305 = scalar_lea.vmem [#allocation2], 384
    %v306 = vld [vmem:[%s305] sm:$0xff]
    %v307 = vld [vmem:[%s305 + $0x8] sm:$0xff]
    %v308 = vld [vmem:[%s305 + $0x10] sm:$0xff]
    %v309 = vld [vmem:[%s305 + $0x18] sm:$0xff]
    %v310 = vld [vmem:[%s305 + $0x20] sm:$0xff]
    %v311 = vld [vmem:[%s305 + $0x28] sm:$0xff]
    %v312 = vld [vmem:[%s305 + $0x30] sm:$0xff]
    %v313 = vld [vmem:[%s305 + $0x38] sm:$0xff]
    %v314 = vld [vmem:[%s305 + $0x40] sm:$0xff]
    %v315 = vld [vmem:[%s305 + $0x48] sm:$0xff]
    %v316 = vld [vmem:[%s305 + $0x50] sm:$0xff]
    %v317 = vld [vmem:[%s305 + $0x58] sm:$0xff]
    %v318 = vld [vmem:[%s305 + $0x60] sm:$0xff]
    %v319 = vld [vmem:[%s305 + $0x68] sm:$0xff]
    %v320 = vld [vmem:[%s305 + $0x70] sm:$0xff]
    %v321 = vld [vmem:[%s305 + $0x78] sm:$0xff]
    %v322 = vlaneseq
    %v323 = vshrl.u32 %v322, 7
    %v324 = vsub.s32 3, %v323
    %v325 = vrot.slane %v29, %v324
    %326 = vmatprep.subr.mxu0 0.0
    %327 = vmatpush1.msra.mxu0 %v306
    %328 = vmatprep.subr.mxu0 0.0
    %329 = vmatpush1.msra.mxu0 %v307
    %330 = vmatprep.subr.mxu0 0.0
    %331 = vmatpush1.msra.mxu0 %v308
    %332 = vmatprep.subr.mxu0 0.0
    %333 = vmatpush1.msra.mxu0 %v309
    %334 = vmatprep.subr.mxu0 0.0
    %335 = vmatpush1.msra.mxu0 %v310
    %336 = vmatprep.subr.mxu0 0.0
    %337 = vmatpush1.msra.mxu0 %v311
    %338 = vmatprep.subr.mxu0 0.0
    %339 = vmatpush1.msra.mxu0 %v312
    %340 = vmatprep.subr.mxu0 0.0
    %341 = vmatpush1.msra.mxu0 %v313
    %342 = vmatprep.subr.mxu0 0.0
    %343 = vmatpush1.msra.mxu0 %v314
    %344 = vmatprep.subr.mxu0 0.0
    %345 = vmatpush1.msra.mxu0 %v315
    %346 = vmatprep.subr.mxu0 0.0
    %347 = vmatpush1.msra.mxu0 %v316
    %348 = vmatprep.subr.mxu0 0.0
    %349 = vmatpush1.msra.mxu0 %v317
    %350 = vmatprep.subr.mxu0 0.0
    %351 = vmatpush1.msra.mxu0 %v318
    %352 = vmatprep.subr.mxu0 0.0
    %353 = vmatpush1.msra.mxu0 %v319
    %354 = vmatprep.subr.mxu0 0.0
    %355 = vmatpush1.msra.mxu0 %v320
    %356 = vmatprep.subr.mxu0 0.0
    %357 = vmatpush1.msra.mxu0 %v321
    %358 = vmatprep.subr.mxu0 0.0
    %359 = vmatpush1.msra.mxu0 0.0
    %360 = vmatprep.subr.mxu0 0.0
    %361 = vmatpush1.msra.mxu0 0.0
    %362 = vmatprep.subr.mxu0 0.0
    %363 = vmatpush1.msra.mxu0 0.0
    %364 = vmatprep.subr.mxu0 0.0
    %365 = vmatpush1.msra.mxu0 0.0
    %366 = vmatprep.subr.mxu0 0.0
    %367 = vmatpush1.msra.mxu0 0.0
    %368 = vmatprep.subr.mxu0 0.0
    %369 = vmatpush1.msra.mxu0 0.0
    %370 = vmatprep.subr.mxu0 0.0
    %371 = vmatpush1.msra.mxu0 0.0
    %372 = vmatprep.subr.mxu0 0.0
    %373 = vmatpush1.msra.mxu0 0.0
    %374 = vmatprep.subr.mxu0 0.0
    %375 = vmatpush1.msra.mxu0 0.0
    %376 = vmatprep.subr.mxu0 0.0
    %377 = vmatpush1.msra.mxu0 0.0
    %378 = vmatprep.subr.mxu0 0.0
    %379 = vmatpush1.msra.mxu0 0.0
    %380 = vmatprep.subr.mxu0 0.0
    %381 = vmatpush1.msra.mxu0 0.0
    %382 = vmatprep.subr.mxu0 0.0
    %383 = vmatpush1.msra.mxu0 0.0
    %384 = vmatprep.subr.mxu0 0.0
    %385 = vmatpush1.msra.mxu0 0.0
    %386 = vmatprep.subr.mxu0 0.0
    %387 = vmatpush1.msra.mxu0 0.0
    %388 = vmatprep.subr.mxu0 0.0
    %389 = vmatpush1.msra.mxu0 0.0
    %390 = vmatprep.mubr.f32.mxu0 0.0
    %391 = vmatmul.mubr.f32.gmra.mrb[0].mxu0 %v304
    %v392 = vpop.f32.mrb[0].mxu0
    %v393 = vadd.f32 %v325, %v392
    %v394 = vpop.f32.mrb[0].mxu0
    %395 = vdwg.mxu0
    %396 = vst [vmem:[%s3] sm:$0xff] %v393
    // Predicated region
    $region18: #{_agent_forward_packed.1} parent=1 // pred_check
      _
    $region19: #{_agent_forward_packed.1} parent=1 // pred_check_branch
      %398 = sbr.rel (0) target = $region21
    $region20: #{_agent_forward_packed.1} parent=1 // pred_region
      _
    $region21: #{_agent_forward_packed.1} parent=1 // pred_fallthru
      _
    // Predicated region
    $region22: #{_agent_forward_packed.1} parent=1 // pred_check
      _
    $region23: #{_agent_forward_packed.1} parent=1 // pred_check_branch
      %400 = sbr.rel (0) target = $region25
    $region24: #{_agent_forward_packed.1} parent=1 // pred_region
      _
    $region25: #{_agent_forward_packed.1} parent=1 // pred_fallthru
      _
    %401 = vsyncpa [#allocation3], 1

</llo_original>
